<compile_context>
chip_gen: v7x
topology: tpu7x:2x2x1
jax: 0.10.0
libtpu: 0.0.40
codegen_flags: <defaults>
</compile_context>

<pallas_src>
import functools

import jax
import jax.numpy as jnp
from jax import lax
from jax.experimental import pallas as pl
from jax.experimental.pallas import tpu as pltpu


def _round_up(x, m):
    return ((x + m - 1) // m) * m


def _cdiv(a, b):
    return -(-a // b)


def _choose_tiling(batch, max_tile_b):
    """Pick (tile_b, b_pad, n_tiles): tile_b multiple of 128, >=2 tiles when possible."""
    b128 = _round_up(max(batch, 1), 128)
    max_tile_b = max(128, _round_up(max_tile_b, 128))
    n_tiles = _cdiv(b128, max_tile_b)
    if n_tiles == 1 and b128 >= 256:
        n_tiles = 2  # >=2 grid steps so both v7x TensorCores get work
    tile_b = _round_up(_cdiv(b128, n_tiles), 128)
    b_pad = n_tiles * tile_b
    return tile_b, b_pad, n_tiles


def fold_encoder_params(params, mxu_dtype=jnp.bfloat16):
    """Host-side algebraic folding. Run ONCE per weight update (not per call).

    Builds table_aug [k_pad, out_dim]:
      rows 0..num_cat-1 : emb @ W_cat_out + (b_bin@W_bin_out + b_num@W_num_out + b_out)
      row  num_cat      : w_bin @ W_bin_out
      row  num_cat+1    : w_num @ W_num_out
      remaining rows    : 0 (sublane padding)
    """
    num_cat, d_cat = params["emb"].shape
    d_bin = params["w_bin"].shape[1]
    d_num = params["w_num"].shape[1]
    out_dim = params["b_out"].shape[1]

    w_out = params["w_out"]                                   # [concat, out_dim]
    w_cat_o = w_out[:d_cat]
    w_bin_o = w_out[d_cat:d_cat + d_bin]
    w_num_o = w_out[d_cat + d_bin:d_cat + d_bin + d_num]

    b_total = (params["b_bin"] @ w_bin_o
               + params["b_num"] @ w_num_o
               + params["b_out"])                             # [1, out_dim]
    fused_table = params["emb"] @ w_cat_o + b_total           # [num_cat, out_dim]
    v_bin = params["w_bin"] @ w_bin_o                         # [1, out_dim]
    v_num = params["w_num"] @ w_num_o                         # [1, out_dim]

    k_pad = _round_up(num_cat + 2, 8)
    table_aug = jnp.zeros((k_pad, out_dim), jnp.float32)
    table_aug = table_aug.at[:num_cat].set(fused_table)
    table_aug = table_aug.at[num_cat].set(v_bin[0])
    table_aug = table_aug.at[num_cat + 1].set(v_num[0])

    return {
        "table": table_aug.astype(mxu_dtype),                 # [k_pad, out_dim]
        "num_cat": int(num_cat),
        "out_dim": int(out_dim),
    }


def _encoder_kernel(packed_ref, table_ref, o_ref, *, num_cat, chunk):
    """Fused encoder, batch-major output.

    packed_ref: f32  [3, TILE_B]       row0 = ids (as exact float ints),
                                       row1 = x_bin, row2 = x_num
    table_ref : bf16 [k_pad, out_dim]  fused table (emb@W+bias, v_bin, v_num, 0-pad)
    o_ref     : f32  [TILE_B, out_dim] batch-major output tile
    """
    k_pad, _ = table_ref.shape
    tile_b = packed_ref.shape[1]
    n_chunks = tile_b // chunk
    mxu_dtype = table_ref.dtype

    def body(c, carry):
        off = pl.multiple_of(c * chunk, chunk)

        ids_row = packed_ref[0:1, pl.ds(off, chunk)]              # [1, chunk] f32
        xb_row = packed_ref[1:2, pl.ds(off, chunk)].astype(mxu_dtype)
        xn_row = packed_ref[2:3, pl.ds(off, chunk)].astype(mxu_dtype)

        # Augmented LHS built in-register (no HBM one-hot):
        #   rows 0..num_cat-1 : one-hot(id)   (ids assumed in [0, num_cat))
        #   row  num_cat      : x_bin
        #   row  num_cat+1    : x_num
        #   rows beyond       : 0
        r = lax.broadcasted_iota(jnp.int32, (k_pad, chunk), 0)
        onehot = (r.astype(jnp.float32) == ids_row).astype(mxu_dtype)
        lhs = jnp.where(r == num_cat, xb_row,
                        jnp.where(r == num_cat + 1, xn_row, onehot))

        # One MXU matmul (transposed-LHS contraction) -> batch-major result.
        out_bm = lax.dot_general(
            lhs, table_ref[...],
            dimension_numbers=(((0,), (0,)), ((), ())),
            preferred_element_type=jnp.float32)                   # [chunk, out_dim]

        o_ref[pl.ds(off, chunk), :] = out_bm.astype(o_ref.dtype)
        return carry

    lax.fori_loop(0, n_chunks, body, 0, unroll=True)


def encoder_forward(cat_ids, x_bin, x_num, folded, *, tile_b=4096, chunk=256):
    """cat_ids: int [B]; x_bin: f32 [B,1]; x_num: f32 [B,1] -> f32 [B, out_dim]."""
    B = cat_ids.shape[0]
    table = folded["table"]
    num_cat = folded["num_cat"]
    k_pad, out_dim = table.shape

    tile_b, b_pad, n_tiles = _choose_tiling(B, tile_b)
    chunk = min(chunk, tile_b)
    if tile_b % chunk != 0:
        chunk = 128                     # tile_b is always a multiple of 128

    # Pack the three inputs into one feature-major array -> one DMA per step.
    pad = b_pad - B
    packed = jnp.concatenate(
        [cat_ids.astype(jnp.float32).reshape(1, B),   # exact for num_cat < 2^24
         x_bin.astype(jnp.float32).reshape(1, B),
         x_num.astype(jnp.float32).reshape(1, B)], axis=0)        # [3, B]
    packed = jnp.pad(packed, ((0, 0), (0, pad)))                  # [3, b_pad]

    kernel = functools.partial(_encoder_kernel, num_cat=num_cat, chunk=chunk)

    flops = 2 * b_pad * k_pad * out_dim
    bytes_accessed = (4 * 3 * b_pad                  # packed inputs
                      + 2 * k_pad * out_dim          # bf16 fused table
                      + 4 * b_pad * out_dim)         # f32 output

    out = pl.pallas_call(
        kernel,
        out_shape=jax.ShapeDtypeStruct((b_pad, out_dim), jnp.float32),
        grid=(n_tiles,),
        in_specs=[
            pl.BlockSpec((3, tile_b), lambda i: (0, i)),          # packed inputs
            pl.BlockSpec((k_pad, out_dim), lambda i: (0, 0)),     # resident table
        ],
        out_specs=pl.BlockSpec((tile_b, out_dim), lambda i: (i, 0)),
        compiler_params=pltpu.CompilerParams(
            dimension_semantics=("parallel",)),
        cost_estimate=pl.CostEstimate(flops=flops, transcendentals=0,
                                      bytes_accessed=bytes_accessed),
    )(packed, table)

    return out[:B]                                                # [B, out_dim]


def _reference(cat_ids, x_bin, x_num, params):
    cat_enc = params["emb"][cat_ids]
    bin_enc = x_bin * params["w_bin"] + params["b_bin"]
    num_enc = x_num * params["w_num"] + params["b_num"]
    concat = jnp.concatenate([cat_enc, bin_enc, num_enc], axis=-1)
    return concat @ params["w_out"] + params["b_out"]


if __name__ == "__main__":
    # synthetic input_variables_dict
    input_vars = {
        "color":  {"type": "categorical", "num_categories": 16, "output_size": 8},
        "flag":   {"type": "binary",      "output_size": 8},
        "amount": {"type": "numerical",   "output_size": 8},
    }
    output_dim = 32
    B = 8
    num_cat = input_vars["color"]["num_categories"]
    d_cat = input_vars["color"]["output_size"]
    d_bin = input_vars["flag"]["output_size"]
    d_num = input_vars["amount"]["output_size"]
    concat = d_cat + d_bin + d_num

    key = jax.random.PRNGKey(0)
    ks = jax.random.split(key, 10)

    params = {
        "emb":   jax.random.normal(ks[0], (num_cat, d_cat), jnp.float32) * 0.1,
        "w_bin": jax.random.normal(ks[1], (1, d_bin), jnp.float32) * 0.1,
        "b_bin": jax.random.normal(ks[2], (1, d_bin), jnp.float32) * 0.1,
        "w_num": jax.random.normal(ks[3], (1, d_num), jnp.float32) * 0.1,
        "b_num": jax.random.normal(ks[4], (1, d_num), jnp.float32) * 0.1,
        # final Linear stored pre-transposed: [concat, output_dim]
        "w_out": jax.random.normal(ks[5], (concat, output_dim), jnp.float32) * 0.1,
        "b_out": jax.random.normal(ks[6], (1, output_dim), jnp.float32) * 0.1,
    }

    cat_ids = jax.random.randint(ks[7], (B,), 0, num_cat, dtype=jnp.int32)
    x_bin = jax.random.bernoulli(ks[8], 0.5, (B, 1)).astype(jnp.float32)
    x_num = jax.random.normal(ks[9], (B, 1), jnp.float32)

    # Weight folding runs ONCE (amortized across forward calls).
    folded = fold_encoder_params(params)

    out = encoder_forward(cat_ids, x_bin, x_num, folded)
    out = jax.block_until_ready(out)

    ref = _reference(cat_ids, x_bin, x_num, params)
    assert out.shape == (B, output_dim)
    # bf16 MXU operands (table / x_num) -> ~1e-3 absolute error vs f32 reference.
    assert jnp.allclose(out, ref, atol=1e-2, rtol=1e-2), \
        f"max abs err = {jnp.max(jnp.abs(out - ref))}"
    print("KERNEL_OK")
</pallas_src>

<mosaic_0001>
module attributes {stable_mosaic.version = 11 : i64} {
  func.func @_encoder_kernel(%arg0: i32, %arg1: memref<3x128xf32, #tpu.memory_space<vmem>>, %arg2: memref<24x32xbf16, #tpu.memory_space<vmem>>, %arg3: memref<128x32xf32, #tpu.memory_space<vmem>>) attributes {dimension_semantics = [#tpu.dimension_semantics<parallel>], iteration_bounds = array<i64: 1>, scalar_prefetch = 0 : i64, scratch_operands = 0 : i64, tpu.core_type = #tpu.core_type<tc>, window_params = [{transform_indices = @transform_0, window_bounds = array<i64: 3, 128>}, {pipeline_mode = #tpu.pipeline_mode<synchronous>, transform_indices = @transform_1, window_bounds = array<i64: 24, 32>}, {transform_indices = @transform_2, window_bounds = array<i64: 128, 32>}]} {
    %c0_i32 = arith.constant 0 : i32
    %c128_i32 = arith.constant 128 : i32
    %0 = arith.muli %c0_i32, %c128_i32 : i32
    %1 = tpu.assume_multiple %0, 128 : i32
    %c0 = arith.constant 0 : index
    %2 = arith.index_cast %1 : i32 to index
    %3 = vector.load %arg1[%c0, %2] : memref<3x128xf32, #tpu.memory_space<vmem>>, vector<1x128xf32>
    %c1 = arith.constant 1 : index
    %4 = arith.index_cast %1 : i32 to index
    %5 = vector.load %arg1[%c1, %4] : memref<3x128xf32, #tpu.memory_space<vmem>>, vector<1x128xf32>
    %6 = arith.truncf %5 : vector<1x128xf32> to vector<1x128xbf16>
    %c2 = arith.constant 2 : index
    %7 = arith.index_cast %1 : i32 to index
    %8 = vector.load %arg1[%c2, %7] : memref<3x128xf32, #tpu.memory_space<vmem>>, vector<1x128xf32>
    %9 = arith.truncf %8 : vector<1x128xf32> to vector<1x128xbf16>
    %10 = tpu.iota {dimensions = array<i32: 0>} : vector<24x128xi32>
    %11 = arith.sitofp %10 : vector<24x128xi32> to vector<24x128xf32>
    %12 = vector.broadcast %3 : vector<1x128xf32> to vector<24x128xf32>
    %13 = arith.cmpf oeq, %11, %12 : vector<24x128xf32>
    %14 = arith.extui %13 : vector<24x128xi1> to vector<24x128xi32>
    %15 = arith.sitofp %14 : vector<24x128xi32> to vector<24x128xf32>
    %16 = arith.truncf %15 : vector<24x128xf32> to vector<24x128xbf16>
    %c16_i32 = arith.constant 16 : i32
    %17 = vector.broadcast %c16_i32 : i32 to vector<24x128xi32>
    %18 = arith.cmpi eq, %10, %17 : vector<24x128xi32>
    %c17_i32 = arith.constant 17 : i32
    %19 = vector.broadcast %c17_i32 : i32 to vector<24x128xi32>
    %20 = arith.cmpi eq, %10, %19 : vector<24x128xi32>
    %21 = vector.shape_cast %9 : vector<1x128xbf16> to vector<1x128xbf16>
    %22 = vector.broadcast %21 : vector<1x128xbf16> to vector<24x128xbf16>
    %23 = arith.select %20, %22, %16 : vector<24x128xi1>, vector<24x128xbf16>
    %24 = vector.shape_cast %6 : vector<1x128xbf16> to vector<1x128xbf16>
    %25 = vector.broadcast %24 : vector<1x128xbf16> to vector<24x128xbf16>
    %26 = arith.select %18, %25, %23 : vector<24x128xi1>, vector<24x128xbf16>
    %c0_0 = arith.constant 0 : index
    %c0_1 = arith.constant 0 : index
    %27 = vector.load %arg2[%c0_0, %c0_1] : memref<24x32xbf16, #tpu.memory_space<vmem>>, vector<24x32xbf16>
    %cst = arith.constant dense<0.000000e+00> : vector<128x32xf32>
    %28 = tpu.matmul %26, %27, %cst {dimension_numbers = #tpu.dot_dimension_numbers<[0], [0], [1], [1], [0, 1, 1, 1], [], []>} : vector<24x128xbf16>, vector<24x32xbf16>, vector<128x32xf32> -> vector<128x32xf32>
    %29 = arith.index_cast %1 : i32 to index
    %c0_2 = arith.constant 0 : index
    %30 = vector.load %arg3[%29, %c0_2] : memref<128x32xf32, #tpu.memory_space<vmem>>, vector<128x32xf32>
    tpu.vector_store %arg3[%29, %c0_2], %28 {strides = array<i32>} : memref<128x32xf32, #tpu.memory_space<vmem>>, vector<128x32xf32>,
    %c1_i32 = arith.constant 1 : i32
    return
  }
  func.func @transform_0(%arg0: i32) -> (i32, i32) {
    %c0_i32 = arith.constant 0 : i32
    %c0_i32_0 = arith.constant 0 : i32
    return %c0_i32, %arg0 : i32, i32
  }
  func.func @transform_1(%arg0: i32) -> (i32, i32) {
    %c0_i32 = arith.constant 0 : i32
    %c0_i32_0 = arith.constant 0 : i32
    %c0_i32_1 = arith.constant 0 : i32
    return %c0_i32, %c0_i32_0 : i32, i32
  }
  func.func @transform_2(%arg0: i32) -> (i32, i32) {
    %c0_i32 = arith.constant 0 : i32
    %c0_i32_0 = arith.constant 0 : i32
    return %arg0, %c0_i32 : i32, i32
  }
}

</mosaic_0001>

<llo_original>
// kernel: tpu_custom_call.1
$region0: #{tpu_custom_call.1}
  #allocation0 [shape = 'u32[]', space=smem, size = 0x4, offset = 0x4, fixed_abs, tag = 'smem constant byte address 0x4 - core index']
  #allocation1 [shape = 'u32[144,128]{1,0:T(1,128)}', space=vmem, size = 0x12000, scoped, tag = 'internal scratch']
  %s0 = inlined_call_operand.hbm [shape: f32[3,128], index: 0, kind: input, shape index: {}]
  %s1 = inlined_call_operand.hbm [shape: bf16[24,32], index: 1, kind: input, shape index: {}]
  %s2 = inlined_call_operand.vmem [shape: f32[128,32], index: 2, kind: output, shape index: {}]
  %s3 = sld [smem:[#allocation0]]
  $region26: #{tpu_custom_call.1} parent=0
    _
  %s5 = ssub.s32 1, %s3
  %s6 = scalar_select 0, %s5, %s3
  $region1: #{tpu_custom_call.1} parent=0
    #allocation2 [shape = 'u8[2048]{0}', space=vmem, size = 0x800, scoped, tag = 'input window, operand 0, single buffered']
    #allocation3 [shape = 's32[1]{0}', space=sflag, size = 0x4, scoped, tag = 'scoped memory for tpu_custom_call.1']
    #allocation4 [shape = 'u8[6144]{0}', space=vmem, size = 0x1800, scoped, tag = 'input window, operand 1, single buffered']
    #allocation5 [shape = 's32[1]{0}', space=sflag, size = 0x4, scoped, tag = 'scoped memory for tpu_custom_call.1']
    %7 = vsyncpa [#allocation3], 0
    %8 = vsyncpa [#allocation5], 0
    // Predicated region
    $region2: #{tpu_custom_call.1} parent=1 // pred_check
      _
    $region3: #{tpu_custom_call.1} parent=1 // pred_check_branch
      %10 = sbr.rel (0) target = $region5
    $region4: #{tpu_custom_call.1} parent=1 // pred_region
      %s12 = ssub.s32 64, 64
      %13 = vsyncadd [#allocation3], %s12
      %s15 = sshll.u32 [#allocation2], 4
      %s16 = int_to_ptr.vmem [resolvable:$true] %s15
      %18 = dma.hbm_to_vmem [thread:$0]  %s0, 64, %s16, [#allocation3]
    $region5: #{tpu_custom_call.1} parent=1 // pred_fallthru
      _
    // Predicated region
    $region6: #{tpu_custom_call.1} parent=1 // pred_check
      _
    $region7: #{tpu_custom_call.1} parent=1 // pred_check_branch
      %20 = sbr.rel (0) target = $region9
    $region8: #{tpu_custom_call.1} parent=1 // pred_region
      %s22 = ssub.s32 192, 192
      %23 = vsyncadd [#allocation5], %s22
      %s24 = sshll.u32 [#allocation4], 4
      %s25 = int_to_ptr.vmem [resolvable:$true] %s24
      %30 = dma.hbm_to_vmem [thread:$0]  %s1, 192, %s25, [#allocation5], 64, 64, 4
    $region9: #{tpu_custom_call.1} parent=1 // pred_fallthru
      _
    // Predicated region
    $region10: #{tpu_custom_call.1} parent=1 // pred_check
      _
    $region11: #{tpu_custom_call.1} parent=1 // pred_check_branch
      %32 = sbr.rel (0) target = $region13
    $region12: #{tpu_custom_call.1} parent=1 // pred_region
      %33 = dma.done [#allocation3], 64
    $region13: #{tpu_custom_call.1} parent=1 // pred_fallthru
      _
    // Predicated region
    $region14: #{tpu_custom_call.1} parent=1 // pred_check
      _
    $region15: #{tpu_custom_call.1} parent=1 // pred_check_branch
      %35 = sbr.rel (0) target = $region17
    $region16: #{tpu_custom_call.1} parent=1 // pred_region
      %36 = dma.done [#allocation5], 192
    $region17: #{tpu_custom_call.1} parent=1 // pred_fallthru
      _
    %v40 = vld [vmem:[#allocation2] sm:$0x1]
    %v41 = vld [vmem:[#allocation2 + $0x1] sm:$0x1]
    %v42 = vpack.c.bf16 %v41, %v41
    %v43 = vld [vmem:[#allocation2 + $0x2] sm:$0x1]
    %v44 = vpack.c.bf16 %v43, %v43
    %v45 = vlaneseq
    %v46 = vshrl.u32 %v45, 7
    %v47 = vadd.s32 %v46, 8
    %v48 = vadd.s32 %v46, 16
    %v49 = vcvt.s32.f32 %v46
    %v50 = vcvt.s32.f32 %v47
    %v51 = vcvt.s32.f32 %v48
    %v52 = vlaneseq
    %v53 = vshrl.u32 %v52, 7
    %v54 = vsub.s32 0, %v53
    %v55 = vrot.slane %v40, %v54
    %vm56 = vcmp.eq.f32.partialorder %v49, %v55
    %vm57 = vcmp.eq.f32.partialorder %v50, %v55
    %vm58 = vcmp.eq.f32.partialorder %v51, %v55
    %v59 = vsel %vm56, 1, 0
    %v60 = vsel %vm57, 1, 0
    %v61 = vsel %vm58, 1, 0
    %v62 = vcvt.s32.f32 %v59
    %v63 = vcvt.s32.f32 %v60
    %v64 = vcvt.s32.f32 %v61
    %v65 = vpack.c.bf16 %v63, %v62
    %v66 = vpack.c.bf16 %v64, %v64
    %vm67 = vcmp.eq.s32.totalorder %v46, 16
    %vm68 = vcmp.eq.s32.totalorder %v47, 16
    %vm69 = vcmp.eq.s32.totalorder %v48, 16
    %vm70 = vcmp.eq.s32.totalorder %v46, 17
    %vm71 = vcmp.eq.s32.totalorder %v47, 17
    %vm72 = vcmp.eq.s32.totalorder %v48, 17
    %v74 = vpack.i.b16 %v44, %v44
    %v76 = vlaneseq
    %v77 = vshrl.u32 %v76, 7
    %v78 = vsub.s32 0, %v77
    %v79 = vrot.slane %v74, %v78
    %vm80 = vmpackc.low %vm70, %vm70
    %vm81 = vmpackc.low %vm71, %vm71
    %vm82 = vmpackc.low %vm72, %vm72
    %v83 = vsel %vm80, 65537, 0
    %v84 = vsel %vm81, 65537, 0
    %v85 = vsel %vm82, 65537, 0
    %v86 = vunpack.c.l.b16 %v83
    %v87 = vunpack.c.l.b16 %v84
    %v88 = vunpack.c.l.b16 %v85
    %v89 = vpack.c.b16 %v87, %v86
    %v90 = vpack.c.b16 %v88, %v88
    %vm91 = vcmp.ne.s16.totalorder %v89, 0
    %vm92 = vcmp.ne.s16.totalorder %v90, 0
    %v93 = vsel %vm91, %v79, %v65
    %v94 = vsel %vm92, %v79, %v66
    %v96 = vpack.i.b16 %v42, %v42
    %v98 = vlaneseq
    %v99 = vshrl.u32 %v98, 7
    %v100 = vsub.s32 0, %v99
    %v101 = vrot.slane %v96, %v100
    %vm102 = vmpackc.low %vm67, %vm67
    %vm103 = vmpackc.low %vm68, %vm68
    %vm104 = vmpackc.low %vm69, %vm69
    %v105 = vsel %vm102, 65537, 0
    %v106 = vsel %vm103, 65537, 0
    %v107 = vsel %vm104, 65537, 0
    %v108 = vunpack.c.l.b16 %v105
    %v109 = vunpack.c.l.b16 %v106
    %v110 = vunpack.c.l.b16 %v107
    %v111 = vpack.c.b16 %v109, %v108
    %v112 = vpack.c.b16 %v110, %v110
    %vm113 = vcmp.ne.s16.totalorder %v111, 0
    %vm114 = vcmp.ne.s16.totalorder %v112, 0
    %v115 = vsel %vm113, %v101, %v93
    %v116 = vsel %vm114, %v101, %v94
    %v117 = vld [vmem:[#allocation4] sm:$0xf]
    %v118 = vld [vmem:[#allocation4 + $0x4] sm:$0xf]
    %v119 = vld [vmem:[#allocation4 + $0x8] sm:$0xf]
    %120 = vxpose.xlu0.c.b16.start [1/8] %v115, 128
    %121 = vxpose.xlu0.c.b16.cont [2/8] %v116, 128
    %122 = vxpose.xlu0.c.b16.cont [3/8] 0, 128
    %123 = vxpose.xlu0.c.b16.cont [4/8] 0, 128
    %124 = vxpose.xlu0.c.b16.cont [5/8] 0, 128
    %125 = vxpose.xlu0.c.b16.cont [6/8] 0, 128
    %126 = vxpose.xlu0.c.b16.cont [7/8] 0, 128
    %127 = vxpose.xlu0.c.b16.end [8/8] 0, 128
    %v128 = vpop.trf.xlu0
    %v129 = vpop.trf.xlu0
    %v130 = vpop.trf.xlu0
    %v131 = vpop.trf.xlu0
    %v132 = vpop.trf.xlu0
    %v133 = vpop.trf.xlu0
    %v134 = vpop.trf.xlu0
    %v135 = vpop.trf.xlu0
    %v139 = vunpack.c.l.b16 %v117
    %v140 = vunpack.c.l.b16 %v118
    %v141 = vunpack.c.l.b16 %v119
    %v142 = vpack.c.b16 %v140, %v139
    %v143 = vpack.c.b16 %v141, %v141
    %vm145 = vcmask 195584
    %v147 = vsel %vm145, %v128, 0
    %v150 = vsel %vm145, %v129, 0
    %v153 = vsel %vm145, %v130, 0
    %v156 = vsel %vm145, %v131, 0
    %v159 = vsel %vm145, %v132, 0
    %v162 = vsel %vm145, %v133, 0
    %v165 = vsel %vm145, %v134, 0
    %v168 = vsel %vm145, %v135, 0
    %vm170 = vcmask 1043456
    %v172 = vsel %vm170, %v143, 0
    %174 = vmatprep.subr.bf16.mxu0 0
    %175 = vmatpush1.bf16.msra.mxu0 %v142
    %176 = vmatprep.subr.bf16.mxu0 0
    %177 = vmatpush1.bf16.msra.mxu0 %v172
    %178 = vmatprep.subr.bf16.mxu0 0
    %179 = vmatpush1.bf16.msra.mxu0 0
    %180 = vmatprep.subr.bf16.mxu0 0
    %181 = vmatpush1.bf16.msra.mxu0 0
    %182 = vmatprep.subr.bf16.mxu0 0
    %183 = vmatpush1.bf16.msra.mxu0 0
    %184 = vmatprep.subr.bf16.mxu0 0
    %185 = vmatpush1.bf16.msra.mxu0 0
    %186 = vmatprep.subr.bf16.mxu0 0
    %187 = vmatpush1.bf16.msra.mxu0 0
    %188 = vmatprep.subr.bf16.mxu0 0
    %189 = vmatpush1.bf16.msra.mxu0 0
    %190 = vmatprep.subr.bf16.mxu0 0
    %191 = vmatpush1.bf16.msra.mxu0 0
    %192 = vmatprep.subr.bf16.mxu0 0
    %193 = vmatpush1.bf16.msra.mxu0 0
    %194 = vmatprep.subr.bf16.mxu0 0
    %195 = vmatpush1.bf16.msra.mxu0 0
    %196 = vmatprep.subr.bf16.mxu0 0
    %197 = vmatpush1.bf16.msra.mxu0 0
    %198 = vmatprep.subr.bf16.mxu0 0
    %199 = vmatpush1.bf16.msra.mxu0 0
    %200 = vmatprep.subr.bf16.mxu0 0
    %201 = vmatpush1.bf16.msra.mxu0 0
    %202 = vmatprep.subr.bf16.mxu0 0
    %203 = vmatpush1.bf16.msra.mxu0 0
    %204 = vmatprep.subr.bf16.mxu0 0
    %205 = vmatpush1.bf16.msra.mxu0 0
    %206 = vmatprep.mubr.bf16.mxu0 0
    %207 = vmatmul.mubr.bf16.gmra.mrb[0].mxu0 %v147
    %v208 = vpop.f32.mrb[0].mxu0
    %v209 = vadd.f32 0.0, %v208
    %v210 = vpop.f32.mrb[0].mxu0
    %v211 = vpop.f32.mrb[0].mxu0
    %v212 = vadd.f32 0.0, %v211
    %v213 = vpop.f32.mrb[0].mxu0
    %214 = vmatprep.mubr.bf16.mxu0 0
    %215 = vmatmul.mubr.bf16.gmra.mrb[0].mxu0 %v150
    %v216 = vpop.f32.mrb[0].mxu0
    %v217 = vadd.f32 0.0, %v216
    %v218 = vpop.f32.mrb[0].mxu0
    %v219 = vpop.f32.mrb[0].mxu0
    %v220 = vadd.f32 0.0, %v219
    %v221 = vpop.f32.mrb[0].mxu0
    %222 = vmatprep.mubr.bf16.mxu0 0
    %223 = vmatmul.mubr.bf16.gmra.mrb[0].mxu0 %v153
    %v224 = vpop.f32.mrb[0].mxu0
    %v225 = vadd.f32 0.0, %v224
    %v226 = vpop.f32.mrb[0].mxu0
    %v227 = vpop.f32.mrb[0].mxu0
    %v228 = vadd.f32 0.0, %v227
    %v229 = vpop.f32.mrb[0].mxu0
    %230 = vmatprep.mubr.bf16.mxu0 0
    %231 = vmatmul.mubr.bf16.gmra.mrb[0].mxu0 %v156
    %v232 = vpop.f32.mrb[0].mxu0
    %v233 = vadd.f32 0.0, %v232
    %v234 = vpop.f32.mrb[0].mxu0
    %v235 = vpop.f32.mrb[0].mxu0
    %v236 = vadd.f32 0.0, %v235
    %v237 = vpop.f32.mrb[0].mxu0
    %238 = vmatprep.mubr.bf16.mxu0 0
    %239 = vmatmul.mubr.bf16.gmra.mrb[0].mxu0 %v159
    %v240 = vpop.f32.mrb[0].mxu0
    %v241 = vadd.f32 0.0, %v240
    %v242 = vpop.f32.mrb[0].mxu0
    %v243 = vpop.f32.mrb[0].mxu0
    %v244 = vadd.f32 0.0, %v243
    %v245 = vpop.f32.mrb[0].mxu0
    %246 = vmatprep.mubr.bf16.mxu0 0
    %247 = vmatmul.mubr.bf16.gmra.mrb[0].mxu0 %v162
    %v248 = vpop.f32.mrb[0].mxu0
    %v249 = vadd.f32 0.0, %v248
    %v250 = vpop.f32.mrb[0].mxu0
    %v251 = vpop.f32.mrb[0].mxu0
    %v252 = vadd.f32 0.0, %v251
    %v253 = vpop.f32.mrb[0].mxu0
    %254 = vmatprep.mubr.bf16.mxu0 0
    %255 = vmatmul.mubr.bf16.gmra.mrb[0].mxu0 %v165
    %v256 = vpop.f32.mrb[0].mxu0
    %v257 = vadd.f32 0.0, %v256
    %v258 = vpop.f32.mrb[0].mxu0
    %v259 = vpop.f32.mrb[0].mxu0
    %v260 = vadd.f32 0.0, %v259
    %v261 = vpop.f32.mrb[0].mxu0
    %262 = vmatprep.mubr.bf16.mxu0 0
    %263 = vmatmul.mubr.bf16.gmra.mrb[0].mxu0 %v168
    %v264 = vpop.f32.mrb[0].mxu0
    %v265 = vadd.f32 0.0, %v264
    %v266 = vpop.f32.mrb[0].mxu0
    %v267 = vpop.f32.mrb[0].mxu0
    %v268 = vadd.f32 0.0, %v267
    %v269 = vpop.f32.mrb[0].mxu0
    %270 = vdwg.mxu0
    %vm271 = vcmask 261120
    %272 = vst.msk [vmem:[%s2] sm:$0xff] %vm271, %v209
    %273 = vst.msk [vmem:[%s2 + $0x8] sm:$0xff] %vm271, %v212
    %274 = vst.msk [vmem:[%s2 + $0x10] sm:$0xff] %vm271, %v217
    %275 = vst.msk [vmem:[%s2 + $0x18] sm:$0xff] %vm271, %v220
    %276 = vst.msk [vmem:[%s2 + $0x20] sm:$0xff] %vm271, %v225
    %277 = vst.msk [vmem:[%s2 + $0x28] sm:$0xff] %vm271, %v228
    %278 = vst.msk [vmem:[%s2 + $0x30] sm:$0xff] %vm271, %v233
    %279 = vst.msk [vmem:[%s2 + $0x38] sm:$0xff] %vm271, %v236
    %280 = vst.msk [vmem:[%s2 + $0x40] sm:$0xff] %vm271, %v241
    %281 = vst.msk [vmem:[%s2 + $0x48] sm:$0xff] %vm271, %v244
    %282 = vst.msk [vmem:[%s2 + $0x50] sm:$0xff] %vm271, %v249
    %283 = vst.msk [vmem:[%s2 + $0x58] sm:$0xff] %vm271, %v252
    %284 = vst.msk [vmem:[%s2 + $0x60] sm:$0xff] %vm271, %v257
    %285 = vst.msk [vmem:[%s2 + $0x68] sm:$0xff] %vm271, %v260
    %286 = vst.msk [vmem:[%s2 + $0x70] sm:$0xff] %vm271, %v265
    %287 = vst.msk [vmem:[%s2 + $0x78] sm:$0xff] %vm271, %v268
    // Predicated region
    $region18: #{tpu_custom_call.1} parent=1 // pred_check
      _
    $region19: #{tpu_custom_call.1} parent=1 // pred_check_branch
      %289 = sbr.rel (0) target = $region21
    $region20: #{tpu_custom_call.1} parent=1 // pred_region
      _
    $region21: #{tpu_custom_call.1} parent=1 // pred_fallthru
      _
    // Predicated region
    $region22: #{tpu_custom_call.1} parent=1 // pred_check
      _
    $region23: #{tpu_custom_call.1} parent=1 // pred_check_branch
      %291 = sbr.rel (0) target = $region25
    $region24: #{tpu_custom_call.1} parent=1 // pred_region
      _
    $region25: #{tpu_custom_call.1} parent=1 // pred_fallthru
      _
    %292 = vsyncpa [#allocation3], 1
    %293 = vsyncpa [#allocation5], 1

</llo_original>
